<compile_context>
chip_gen: v5e
topology: v5e:2x2
jax: 0.10.0
libtpu: 0.0.40
codegen_flags: <defaults>
</compile_context>

<pallas_src>
import math

import jax
import jax.numpy as jnp
from jax import lax
from jax.experimental import pallas as pl
from jax.experimental.pallas import tpu as pltpu


def _axis_phase_plan(n_in, n_out, K, s, p):
    """Sub-pixel plan along one spatial axis.

    Output positions of phase t are oh = t + s*m (m = 0..NP-1, NP=ceil(n_out/s));
    each phase is a stride-1 VALID correlation whose taps are (delta, k):
        out_phase_t[m] += x[m + delta] * w[k]
    with out-of-range x reads supplied by zero padding.
    """
    NP = -(-n_out // s)
    plan, deltas = [], set()
    for t in range(s):
        r = (t + p) % s               # kernel-index residue feeding this phase
        a0 = (t + p) // s
        taps = []
        for k in range(r, K, s):
            j = (k - r) // s
            d = a0 - j                # input index = m + d
            taps.append((d, k))
            deltas.add(d)
        plan.append(taps)
    deltas = sorted(deltas) if deltas else [0]
    pad_lo = max(0, -deltas[0])
    pad_hi = max(0, deltas[-1] + NP - n_in)
    return NP, plan, deltas, pad_lo, pad_hi


def _pick_batch_tile(N):
    # Amortize the ~0.35us per-grid-step overhead for larger batches, but keep
    # >= 2 grid steps when possible so both v7x TensorCores get work under
    # dimension_semantics=("parallel",).  Blocks stay tiny (<< VMEM on all gens).
    for bt in (8, 4, 2):
        if N % bt == 0 and N // bt >= 2:
            return bt
    return 1


def _make_kernel(B_t, n_phase, C_out, L, fma_plan):
    def kernel(x_ref, w_ref, b_ref, o_ref):
        # x_ref: (B_t, S, C_in, L)        lane-dense shifted/flattened windows
        # w_ref: (C_out, NF)              weight columns, C_out on sublanes
        # b_ref: (C_out, 1)               bias column
        # o_ref: (B_t, n_phase, C_out, L) lane-dense phase outputs
        bias_col = b_ref[...]                                   # (C_out, 1)
        for b in range(B_t):
            for p_idx in range(n_phase):
                # One (C_out, L) accumulator live at a time (2 dense vregs here).
                acc = jnp.broadcast_to(bias_col, (C_out, L))
                for (sidx, ci, col) in fma_plan[p_idx]:
                    patch = x_ref[b, sidx, ci:ci + 1, :]        # (1, L) dense row
                    wcol = w_ref[:, col:col + 1]                # (C_out, 1)
                    # Rank-1 VPU FMA: all C_out channels of this phase at once.
                    acc = acc + wcol * patch
                o_ref[b, p_idx, :, :] = acc.astype(o_ref.dtype)
    return kernel


def equalized_conv_transpose2d(x_nchw, weight, bias, stride, padding):
    """Equivalent of EqualizedConvTranspose2d.forward (NCHW in / NCHW out)."""
    N, C_in, H, W = x_nchw.shape
    w_cin, C_out, K, Kw = weight.shape
    assert w_cin == C_in and K == Kw
    s, p = int(stride), int(padding)
    scale = math.sqrt(2.0) / math.sqrt(C_in)

    H_out = (H - 1) * s - 2 * p + K
    W_out = (W - 1) * s - 2 * p + K
    assert H_out > 0 and W_out > 0

    NPH, row_plan, dhs, plh, prh = _axis_phase_plan(H, H_out, K, s, p)
    NPW, col_plan, dws, plw, prw = _axis_phase_plan(W, W_out, K, s, p)
    L = NPH * NPW
    dh_idx = {d: i for i, d in enumerate(dhs)}
    dw_idx = {d: i for i, d in enumerate(dws)}
    S = len(dhs) * len(dws)

    x = x_nchw.astype(jnp.float32)
    # Minimal edge pad only (no stride-dilated zero insertion).
    x_pad = jnp.pad(x, ((0, 0), (0, 0), (plh, prh), (plw, prw)))

    # Pre-shift + flatten each distinct (dh, dw) window once (layout plumbing,
    # no arithmetic): in-kernel patch reads are lane-aligned dense (L,) rows.
    wins = []
    for dh in dhs:
        for dw in dws:
            sl = lax.slice(x_pad, (0, 0, dh + plh, dw + plw),
                           (N, C_in, dh + plh + NPH, dw + plw + NPW))
            wins.append(sl.reshape(N, C_in, L))
    x_sh = jnp.stack(wins, axis=1)                       # (N, S, C_in, L)

    # Weight table: one scaled (C_out,) column per (phase, tap, ci); the tap ->
    # kernel-index mapping already encodes the transposed-conv "flip".
    w_scaled = weight.astype(jnp.float32) * scale
    cols, fma_plan = [], []
    col = 0
    for th in range(s):
        for tw in range(s):
            fmas = []
            for (dh, kh) in row_plan[th]:
                for (dw, kw) in col_plan[tw]:
                    sidx = dh_idx[dh] * len(dws) + dw_idx[dw]
                    for ci in range(C_in):
                        cols.append(w_scaled[ci, :, kh, kw])
                        fmas.append((sidx, ci, col))
                        col += 1
            fma_plan.append(fmas)
    NF = col
    w_tab = jnp.stack(cols, axis=1)                      # (C_out, NF)
    b_col = (bias if bias is not None
             else jnp.zeros((C_out,), jnp.float32)).astype(jnp.float32)
    b_col = b_col.reshape(C_out, 1)

    n_phase = s * s
    B_t = _pick_batch_tile(N)
    grid = (N // B_t,)

    kernel = _make_kernel(B_t, n_phase, C_out, L, fma_plan)

    out_ph = pl.pallas_call(
        kernel,
        out_shape=jax.ShapeDtypeStruct((N, n_phase, C_out, L), jnp.float32),
        grid_spec=pltpu.PrefetchScalarGridSpec(
            num_scalar_prefetch=0,
            grid=grid,
            in_specs=[
                # Last-two dims equal full extents (C_in, L) -> (8,128) exempt;
                # L is a multiple of the NPW flattening, lane-dense reads.
                pl.BlockSpec((B_t, S, C_in, L), lambda n: (n, 0, 0, 0)),
                pl.BlockSpec((C_out, NF), lambda n: (0, 0)),
                pl.BlockSpec((C_out, 1), lambda n: (0, 0)),
            ],
            # Lane-dense output block: last two dims (C_out, L) = (8, 256) here
            # -> fully dense, unmasked stores (helps most on v5e's single vst).
            out_specs=pl.BlockSpec((B_t, n_phase, C_out, L),
                                   lambda n: (n, 0, 0, 0)),
        ),
        compiler_params=pltpu.CompilerParams(
            dimension_semantics=("parallel",)),
    )(x_sh, w_tab, b_col)

    # Pixel-shuffle the s*s phase slabs back to NCHW and crop phase padding.
    out = out_ph.reshape(N, s, s, C_out, NPH, NPW)
    out = jnp.transpose(out, (0, 3, 4, 1, 5, 2))         # (N,Co,NPH,s,NPW,s)
    out = out.reshape(N, C_out, NPH * s, NPW * s)
    return out[:, :, :H_out, :W_out]


def _reference(x_nchw, weight, bias, stride, padding):
    """Pure-JAX reference with identical math (for a correctness check)."""
    N, C_in, H, W = x_nchw.shape
    _, C_out, K, _ = weight.shape
    s, p = stride, padding
    scale = math.sqrt(2.0) / math.sqrt(C_in)
    ep = K - 1 - p
    x = jnp.transpose(x_nchw, (0, 2, 3, 1)).astype(jnp.float32)
    w_hwio = (jnp.transpose(weight[:, :, ::-1, ::-1], (2, 3, 0, 1)) * scale
              ).astype(jnp.float32)
    b = (bias if bias is not None else jnp.zeros((C_out,), jnp.float32))
    out = lax.conv_general_dilated(
        x, w_hwio, window_strides=(1, 1),
        padding=[(ep, ep), (ep, ep)],
        lhs_dilation=(s, s),
        dimension_numbers=("NHWC", "HWIO", "NHWC"),
    ) + b.reshape(1, 1, 1, C_out)
    return jnp.transpose(out, (0, 3, 1, 2))


if __name__ == "__main__":
    # Module config (deterministic, synthetic): c_in=4, c_out=8, K=3, s=2, p=1
    N, C_IN, C_OUT, K, STRIDE, PAD = 2, 4, 8, 3, 2, 1
    H = W = 16

    key = jax.random.PRNGKey(0)
    kx, kw = jax.random.split(key)
    x = jax.random.normal(kx, (N, C_IN, H, W), dtype=jnp.float32)
    # nn.init.normal_ -> standard normal; bias -> zeros (FloatTensor.fill_(0))
    weight = jax.random.normal(kw, (C_IN, C_OUT, K, K), dtype=jnp.float32)
    bias = jnp.zeros((C_OUT,), dtype=jnp.float32)

    out = equalized_conv_transpose2d(x, weight, bias, STRIDE, PAD)
    out = jax.block_until_ready(out)

    ref = jax.block_until_ready(_reference(x, weight, bias, STRIDE, PAD))
    assert out.shape == ref.shape == (N, C_OUT, (H - 1) * STRIDE - 2 * PAD + K,
                                      (W - 1) * STRIDE - 2 * PAD + K)
    assert jnp.allclose(out, ref, atol=1e-4, rtol=1e-4)

    print("KERNEL_OK")
</pallas_src>

<mosaic_0001>
module attributes {stable_mosaic.version = 11 : i64} {
  func.func @kernel(%arg0: i32, %arg1: memref<1x4x4x256xf32, #tpu.memory_space<vmem>>, %arg2: memref<8x36xf32, #tpu.memory_space<vmem>>, %arg3: memref<8x1xf32, #tpu.memory_space<vmem>>, %arg4: memref<1x4x8x256xf32, #tpu.memory_space<vmem>>) attributes {dimension_semantics = [#tpu.dimension_semantics<parallel>], iteration_bounds = array<i64: 2>, scalar_prefetch = 0 : i64, scratch_operands = 0 : i64, tpu.core_type = #tpu.core_type<tc>, window_params = [{transform_indices = @transform_0, window_bounds = array<i64: 1, 4, 4, 256>}, {pipeline_mode = #tpu.pipeline_mode<synchronous>, transform_indices = @transform_1, window_bounds = array<i64: 8, 36>}, {pipeline_mode = #tpu.pipeline_mode<synchronous>, transform_indices = @transform_2, window_bounds = array<i64: 8, 1>}, {transform_indices = @transform_3, window_bounds = array<i64: 1, 4, 8, 256>}]} {
    %c0 = arith.constant 0 : index
    %c0_0 = arith.constant 0 : index
    %0 = vector.load %arg3[%c0, %c0_0] : memref<8x1xf32, #tpu.memory_space<vmem>>, vector<8x1xf32>
    %1 = vector.shape_cast %0 : vector<8x1xf32> to vector<8x1xf32>
    %2 = vector.broadcast %1 : vector<8x1xf32> to vector<8x256xf32>
    %c0_1 = arith.constant 0 : index
    %c0_2 = arith.constant 0 : index
    %c0_3 = arith.constant 0 : index
    %c0_4 = arith.constant 0 : index
    %3 = vector.load %arg1[%c0_1, %c0_2, %c0_3, %c0_4] : memref<1x4x4x256xf32, #tpu.memory_space<vmem>>, vector<1x1x1x256xf32>
    %4 = vector.shape_cast %3 : vector<1x1x1x256xf32> to vector<1x256xf32>
    %c0_5 = arith.constant 0 : index
    %c0_6 = arith.constant 0 : index
    %5 = vector.load %arg2[%c0_5, %c0_6] : memref<8x36xf32, #tpu.memory_space<vmem>>, vector<8x1xf32>
    %6 = vector.broadcast %5 : vector<8x1xf32> to vector<8x256xf32>
    %7 = vector.broadcast %4 : vector<1x256xf32> to vector<8x256xf32>
    %8 = arith.mulf %6, %7 : vector<8x256xf32>
    %9 = arith.addf %2, %8 : vector<8x256xf32>
    %c0_7 = arith.constant 0 : index
    %c0_8 = arith.constant 0 : index
    %c1 = arith.constant 1 : index
    %c0_9 = arith.constant 0 : index
    %10 = vector.load %arg1[%c0_7, %c0_8, %c1, %c0_9] : memref<1x4x4x256xf32, #tpu.memory_space<vmem>>, vector<1x1x1x256xf32>
    %11 = vector.shape_cast %10 : vector<1x1x1x256xf32> to vector<1x256xf32>
    %c0_10 = arith.constant 0 : index
    %c1_11 = arith.constant 1 : index
    %12 = vector.load %arg2[%c0_10, %c1_11] : memref<8x36xf32, #tpu.memory_space<vmem>>, vector<8x1xf32>
    %13 = vector.broadcast %12 : vector<8x1xf32> to vector<8x256xf32>
    %14 = vector.broadcast %11 : vector<1x256xf32> to vector<8x256xf32>
    %15 = arith.mulf %13, %14 : vector<8x256xf32>
    %16 = arith.addf %9, %15 : vector<8x256xf32>
    %c0_12 = arith.constant 0 : index
    %c0_13 = arith.constant 0 : index
    %c2 = arith.constant 2 : index
    %c0_14 = arith.constant 0 : index
    %17 = vector.load %arg1[%c0_12, %c0_13, %c2, %c0_14] : memref<1x4x4x256xf32, #tpu.memory_space<vmem>>, vector<1x1x1x256xf32>
    %18 = vector.shape_cast %17 : vector<1x1x1x256xf32> to vector<1x256xf32>
    %c0_15 = arith.constant 0 : index
    %c2_16 = arith.constant 2 : index
    %19 = vector.load %arg2[%c0_15, %c2_16] : memref<8x36xf32, #tpu.memory_space<vmem>>, vector<8x1xf32>
    %20 = vector.broadcast %19 : vector<8x1xf32> to vector<8x256xf32>
    %21 = vector.broadcast %18 : vector<1x256xf32> to vector<8x256xf32>
    %22 = arith.mulf %20, %21 : vector<8x256xf32>
    %23 = arith.addf %16, %22 : vector<8x256xf32>
    %c0_17 = arith.constant 0 : index
    %c0_18 = arith.constant 0 : index
    %c3 = arith.constant 3 : index
    %c0_19 = arith.constant 0 : index
    %24 = vector.load %arg1[%c0_17, %c0_18, %c3, %c0_19] : memref<1x4x4x256xf32, #tpu.memory_space<vmem>>, vector<1x1x1x256xf32>
    %25 = vector.shape_cast %24 : vector<1x1x1x256xf32> to vector<1x256xf32>
    %c0_20 = arith.constant 0 : index
    %c3_21 = arith.constant 3 : index
    %26 = vector.load %arg2[%c0_20, %c3_21] : memref<8x36xf32, #tpu.memory_space<vmem>>, vector<8x1xf32>
    %27 = vector.broadcast %26 : vector<8x1xf32> to vector<8x256xf32>
    %28 = vector.broadcast %25 : vector<1x256xf32> to vector<8x256xf32>
    %29 = arith.mulf %27, %28 : vector<8x256xf32>
    %30 = arith.addf %23, %29 : vector<8x256xf32>
    %c0_22 = arith.constant 0 : index
    %c0_23 = arith.constant 0 : index
    %c0_24 = arith.constant 0 : index
    %c0_25 = arith.constant 0 : index
    %31 = vector.load %arg4[%c0_22, %c0_23, %c0_24, %c0_25] : memref<1x4x8x256xf32, #tpu.memory_space<vmem>>, vector<1x1x8x256xf32>
    %32 = vector.shape_cast %31 : vector<1x1x8x256xf32> to vector<8x256xf32>
    %33 = vector.shape_cast %30 : vector<8x256xf32> to vector<1x1x8x256xf32>
    tpu.vector_store %arg4[%c0_22, %c0_23, %c0_24, %c0_25], %33 {strides = array<i32>} : memref<1x4x8x256xf32, #tpu.memory_space<vmem>>, vector<1x1x8x256xf32>,
    %34 = vector.shape_cast %0 : vector<8x1xf32> to vector<8x1xf32>
    %35 = vector.broadcast %34 : vector<8x1xf32> to vector<8x256xf32>
    %c0_26 = arith.constant 0 : index
    %c1_27 = arith.constant 1 : index
    %c0_28 = arith.constant 0 : index
    %c0_29 = arith.constant 0 : index
    %36 = vector.load %arg1[%c0_26, %c1_27, %c0_28, %c0_29] : memref<1x4x4x256xf32, #tpu.memory_space<vmem>>, vector<1x1x1x256xf32>
    %37 = vector.shape_cast %36 : vector<1x1x1x256xf32> to vector<1x256xf32>
    %c0_30 = arith.constant 0 : index
    %c4 = arith.constant 4 : index
    %38 = vector.load %arg2[%c0_30, %c4] : memref<8x36xf32, #tpu.memory_space<vmem>>, vector<8x1xf32>
    %39 = vector.broadcast %38 : vector<8x1xf32> to vector<8x256xf32>
    %40 = vector.broadcast %37 : vector<1x256xf32> to vector<8x256xf32>
    %41 = arith.mulf %39, %40 : vector<8x256xf32>
    %42 = arith.addf %35, %41 : vector<8x256xf32>
    %c0_31 = arith.constant 0 : index
    %c1_32 = arith.constant 1 : index
    %c1_33 = arith.constant 1 : index
    %c0_34 = arith.constant 0 : index
    %43 = vector.load %arg1[%c0_31, %c1_32, %c1_33, %c0_34] : memref<1x4x4x256xf32, #tpu.memory_space<vmem>>, vector<1x1x1x256xf32>
    %44 = vector.shape_cast %43 : vector<1x1x1x256xf32> to vector<1x256xf32>
    %c0_35 = arith.constant 0 : index
    %c5 = arith.constant 5 : index
    %45 = vector.load %arg2[%c0_35, %c5] : memref<8x36xf32, #tpu.memory_space<vmem>>, vector<8x1xf32>
    %46 = vector.broadcast %45 : vector<8x1xf32> to vector<8x256xf32>
    %47 = vector.broadcast %44 : vector<1x256xf32> to vector<8x256xf32>
    %48 = arith.mulf %46, %47 : vector<8x256xf32>
    %49 = arith.addf %42, %48 : vector<8x256xf32>
    %c0_36 = arith.constant 0 : index
    %c1_37 = arith.constant 1 : index
    %c2_38 = arith.constant 2 : index
    %c0_39 = arith.constant 0 : index
    %50 = vector.load %arg1[%c0_36, %c1_37, %c2_38, %c0_39] : memref<1x4x4x256xf32, #tpu.memory_space<vmem>>, vector<1x1x1x256xf32>
    %51 = vector.shape_cast %50 : vector<1x1x1x256xf32> to vector<1x256xf32>
    %c0_40 = arith.constant 0 : index
    %c6 = arith.constant 6 : index
    %52 = vector.load %arg2[%c0_40, %c6] : memref<8x36xf32, #tpu.memory_space<vmem>>, vector<8x1xf32>
    %53 = vector.broadcast %52 : vector<8x1xf32> to vector<8x256xf32>
    %54 = vector.broadcast %51 : vector<1x256xf32> to vector<8x256xf32>
    %55 = arith.mulf %53, %54 : vector<8x256xf32>
    %56 = arith.addf %49, %55 : vector<8x256xf32>
    %c0_41 = arith.constant 0 : index
    %c1_42 = arith.constant 1 : index
    %c3_43 = arith.constant 3 : index
    %c0_44 = arith.constant 0 : index
    %57 = vector.load %arg1[%c0_41, %c1_42, %c3_43, %c0_44] : memref<1x4x4x256xf32, #tpu.memory_space<vmem>>, vector<1x1x1x256xf32>
    %58 = vector.shape_cast %57 : vector<1x1x1x256xf32> to vector<1x256xf32>
    %c0_45 = arith.constant 0 : index
    %c7 = arith.constant 7 : index
    %59 = vector.load %arg2[%c0_45, %c7] : memref<8x36xf32, #tpu.memory_space<vmem>>, vector<8x1xf32>
    %60 = vector.broadcast %59 : vector<8x1xf32> to vector<8x256xf32>
    %61 = vector.broadcast %58 : vector<1x256xf32> to vector<8x256xf32>
    %62 = arith.mulf %60, %61 : vector<8x256xf32>
    %63 = arith.addf %56, %62 : vector<8x256xf32>
    %c0_46 = arith.constant 0 : index
    %c0_47 = arith.constant 0 : index
    %c0_48 = arith.constant 0 : index
    %c0_49 = arith.constant 0 : index
    %64 = vector.load %arg1[%c0_46, %c0_47, %c0_48, %c0_49] : memref<1x4x4x256xf32, #tpu.memory_space<vmem>>, vector<1x1x1x256xf32>
    %65 = vector.shape_cast %64 : vector<1x1x1x256xf32> to vector<1x256xf32>
    %c0_50 = arith.constant 0 : index
    %c8 = arith.constant 8 : index
    %66 = vector.load %arg2[%c0_50, %c8] : memref<8x36xf32, #tpu.memory_space<vmem>>, vector<8x1xf32>
    %67 = vector.broadcast %66 : vector<8x1xf32> to vector<8x256xf32>
    %68 = vector.broadcast %65 : vector<1x256xf32> to vector<8x256xf32>
    %69 = arith.mulf %67, %68 : vector<8x256xf32>
    %70 = arith.addf %63, %69 : vector<8x256xf32>
    %c0_51 = arith.constant 0 : index
    %c0_52 = arith.constant 0 : index
    %c1_53 = arith.constant 1 : index
    %c0_54 = arith.constant 0 : index
    %71 = vector.load %arg1[%c0_51, %c0_52, %c1_53, %c0_54] : memref<1x4x4x256xf32, #tpu.memory_space<vmem>>, vector<1x1x1x256xf32>
    %72 = vector.shape_cast %71 : vector<1x1x1x256xf32> to vector<1x256xf32>
    %c0_55 = arith.constant 0 : index
    %c9 = arith.constant 9 : index
    %73 = vector.load %arg2[%c0_55, %c9] : memref<8x36xf32, #tpu.memory_space<vmem>>, vector<8x1xf32>
    %74 = vector.broadcast %73 : vector<8x1xf32> to vector<8x256xf32>
    %75 = vector.broadcast %72 : vector<1x256xf32> to vector<8x256xf32>
    %76 = arith.mulf %74, %75 : vector<8x256xf32>
    %77 = arith.addf %70, %76 : vector<8x256xf32>
    %c0_56 = arith.constant 0 : index
    %c0_57 = arith.constant 0 : index
    %c2_58 = arith.constant 2 : index
    %c0_59 = arith.constant 0 : index
    %78 = vector.load %arg1[%c0_56, %c0_57, %c2_58, %c0_59] : memref<1x4x4x256xf32, #tpu.memory_space<vmem>>, vector<1x1x1x256xf32>
    %79 = vector.shape_cast %78 : vector<1x1x1x256xf32> to vector<1x256xf32>
    %c0_60 = arith.constant 0 : index
    %c10 = arith.constant 10 : index
    %80 = vector.load %arg2[%c0_60, %c10] : memref<8x36xf32, #tpu.memory_space<vmem>>, vector<8x1xf32>
    %81 = vector.broadcast %80 : vector<8x1xf32> to vector<8x256xf32>
    %82 = vector.broadcast %79 : vector<1x256xf32> to vector<8x256xf32>
    %83 = arith.mulf %81, %82 : vector<8x256xf32>
    %84 = arith.addf %77, %83 : vector<8x256xf32>
    %c0_61 = arith.constant 0 : index
    %c0_62 = arith.constant 0 : index
    %c3_63 = arith.constant 3 : index
    %c0_64 = arith.constant 0 : index
    %85 = vector.load %arg1[%c0_61, %c0_62, %c3_63, %c0_64] : memref<1x4x4x256xf32, #tpu.memory_space<vmem>>, vector<1x1x1x256xf32>
    %86 = vector.shape_cast %85 : vector<1x1x1x256xf32> to vector<1x256xf32>
    %c0_65 = arith.constant 0 : index
    %c11 = arith.constant 11 : index
    %87 = vector.load %arg2[%c0_65, %c11] : memref<8x36xf32, #tpu.memory_space<vmem>>, vector<8x1xf32>
    %88 = vector.broadcast %87 : vector<8x1xf32> to vector<8x256xf32>
    %89 = vector.broadcast %86 : vector<1x256xf32> to vector<8x256xf32>
    %90 = arith.mulf %88, %89 : vector<8x256xf32>
    %91 = arith.addf %84, %90 : vector<8x256xf32>
    %c0_66 = arith.constant 0 : index
    %c1_67 = arith.constant 1 : index
    %c0_68 = arith.constant 0 : index
    %c0_69 = arith.constant 0 : index
    %92 = vector.load %arg4[%c0_66, %c1_67, %c0_68, %c0_69] : memref<1x4x8x256xf32, #tpu.memory_space<vmem>>, vector<1x1x8x256xf32>
    %93 = vector.shape_cast %92 : vector<1x1x8x256xf32> to vector<8x256xf32>
    %94 = vector.shape_cast %91 : vector<8x256xf32> to vector<1x1x8x256xf32>
    tpu.vector_store %arg4[%c0_66, %c1_67, %c0_68, %c0_69], %94 {strides = array<i32>} : memref<1x4x8x256xf32, #tpu.memory_space<vmem>>, vector<1x1x8x256xf32>,
    %95 = vector.shape_cast %0 : vector<8x1xf32> to vector<8x1xf32>
    %96 = vector.broadcast %95 : vector<8x1xf32> to vector<8x256xf32>
    %c0_70 = arith.constant 0 : index
    %c2_71 = arith.constant 2 : index
    %c0_72 = arith.constant 0 : index
    %c0_73 = arith.constant 0 : index
    %97 = vector.load %arg1[%c0_70, %c2_71, %c0_72, %c0_73] : memref<1x4x4x256xf32, #tpu.memory_space<vmem>>, vector<1x1x1x256xf32>
    %98 = vector.shape_cast %97 : vector<1x1x1x256xf32> to vector<1x256xf32>
    %c0_74 = arith.constant 0 : index
    %c12 = arith.constant 12 : index
    %99 = vector.load %arg2[%c0_74, %c12] : memref<8x36xf32, #tpu.memory_space<vmem>>, vector<8x1xf32>
    %100 = vector.broadcast %99 : vector<8x1xf32> to vector<8x256xf32>
    %101 = vector.broadcast %98 : vector<1x256xf32> to vector<8x256xf32>
    %102 = arith.mulf %100, %101 : vector<8x256xf32>
    %103 = arith.addf %96, %102 : vector<8x256xf32>
    %c0_75 = arith.constant 0 : index
    %c2_76 = arith.constant 2 : index
    %c1_77 = arith.constant 1 : index
    %c0_78 = arith.constant 0 : index
    %104 = vector.load %arg1[%c0_75, %c2_76, %c1_77, %c0_78] : memref<1x4x4x256xf32, #tpu.memory_space<vmem>>, vector<1x1x1x256xf32>
    %105 = vector.shape_cast %104 : vector<1x1x1x256xf32> to vector<1x256xf32>
    %c0_79 = arith.constant 0 : index
    %c13 = arith.constant 13 : index
    %106 = vector.load %arg2[%c0_79, %c13] : memref<8x36xf32, #tpu.memory_space<vmem>>, vector<8x1xf32>
    %107 = vector.broadcast %106 : vector<8x1xf32> to vector<8x256xf32>
    %108 = vector.broadcast %105 : vector<1x256xf32> to vector<8x256xf32>
    %109 = arith.mulf %107, %108 : vector<8x256xf32>
    %110 = arith.addf %103, %109 : vector<8x256xf32>
    %c0_80 = arith.constant 0 : index
    %c2_81 = arith.constant 2 : index
    %c2_82 = arith.constant 2 : index
    %c0_83 = arith.constant 0 : index
    %111 = vector.load %arg1[%c0_80, %c2_81, %c2_82, %c0_83] : memref<1x4x4x256xf32, #tpu.memory_space<vmem>>, vector<1x1x1x256xf32>
    %112 = vector.shape_cast %111 : vector<1x1x1x256xf32> to vector<1x256xf32>
    %c0_84 = arith.constant 0 : index
    %c14 = arith.constant 14 : index
    %113 = vector.load %arg2[%c0_84, %c14] : memref<8x36xf32, #tpu.memory_space<vmem>>, vector<8x1xf32>
    %114 = vector.broadcast %113 : vector<8x1xf32> to vector<8x256xf32>
    %115 = vector.broadcast %112 : vector<1x256xf32> to vector<8x256xf32>
    %116 = arith.mulf %114, %115 : vector<8x256xf32>
    %117 = arith.addf %110, %116 : vector<8x256xf32>
    %c0_85 = arith.constant 0 : index
    %c2_86 = arith.constant 2 : index
    %c3_87 = arith.constant 3 : index
    %c0_88 = arith.constant 0 : index
    %118 = vector.load %arg1[%c0_85, %c2_86, %c3_87, %c0_88] : memref<1x4x4x256xf32, #tpu.memory_space<vmem>>, vector<1x1x1x256xf32>
    %119 = vector.shape_cast %118 : vector<1x1x1x256xf32> to vector<1x256xf32>
    %c0_89 = arith.constant 0 : index
    %c15 = arith.constant 15 : index
    %120 = vector.load %arg2[%c0_89, %c15] : memref<8x36xf32, #tpu.memory_space<vmem>>, vector<8x1xf32>
    %121 = vector.broadcast %120 : vector<8x1xf32> to vector<8x256xf32>
    %122 = vector.broadcast %119 : vector<1x256xf32> to vector<8x256xf32>
    %123 = arith.mulf %121, %122 : vector<8x256xf32>
    %124 = arith.addf %117, %123 : vector<8x256xf32>
    %c0_90 = arith.constant 0 : index
    %c0_91 = arith.constant 0 : index
    %c0_92 = arith.constant 0 : index
    %c0_93 = arith.constant 0 : index
    %125 = vector.load %arg1[%c0_90, %c0_91, %c0_92, %c0_93] : memref<1x4x4x256xf32, #tpu.memory_space<vmem>>, vector<1x1x1x256xf32>
    %126 = vector.shape_cast %125 : vector<1x1x1x256xf32> to vector<1x256xf32>
    %c0_94 = arith.constant 0 : index
    %c16 = arith.constant 16 : index
    %127 = vector.load %arg2[%c0_94, %c16] : memref<8x36xf32, #tpu.memory_space<vmem>>, vector<8x1xf32>
    %128 = vector.broadcast %127 : vector<8x1xf32> to vector<8x256xf32>
    %129 = vector.broadcast %126 : vector<1x256xf32> to vector<8x256xf32>
    %130 = arith.mulf %128, %129 : vector<8x256xf32>
    %131 = arith.addf %124, %130 : vector<8x256xf32>
    %c0_95 = arith.constant 0 : index
    %c0_96 = arith.constant 0 : index
    %c1_97 = arith.constant 1 : index
    %c0_98 = arith.constant 0 : index
    %132 = vector.load %arg1[%c0_95, %c0_96, %c1_97, %c0_98] : memref<1x4x4x256xf32, #tpu.memory_space<vmem>>, vector<1x1x1x256xf32>
    %133 = vector.shape_cast %132 : vector<1x1x1x256xf32> to vector<1x256xf32>
    %c0_99 = arith.constant 0 : index
    %c17 = arith.constant 17 : index
    %134 = vector.load %arg2[%c0_99, %c17] : memref<8x36xf32, #tpu.memory_space<vmem>>, vector<8x1xf32>
    %135 = vector.broadcast %134 : vector<8x1xf32> to vector<8x256xf32>
    %136 = vector.broadcast %133 : vector<1x256xf32> to vector<8x256xf32>
    %137 = arith.mulf %135, %136 : vector<8x256xf32>
    %138 = arith.addf %131, %137 : vector<8x256xf32>
    %c0_100 = arith.constant 0 : index
    %c0_101 = arith.constant 0 : index
    %c2_102 = arith.constant 2 : index
    %c0_103 = arith.constant 0 : index
    %139 = vector.load %arg1[%c0_100, %c0_101, %c2_102, %c0_103] : memref<1x4x4x256xf32, #tpu.memory_space<vmem>>, vector<1x1x1x256xf32>
    %140 = vector.shape_cast %139 : vector<1x1x1x256xf32> to vector<1x256xf32>
    %c0_104 = arith.constant 0 : index
    %c18 = arith.constant 18 : index
    %141 = vector.load %arg2[%c0_104, %c18] : memref<8x36xf32, #tpu.memory_space<vmem>>, vector<8x1xf32>
    %142 = vector.broadcast %141 : vector<8x1xf32> to vector<8x256xf32>
    %143 = vector.broadcast %140 : vector<1x256xf32> to vector<8x256xf32>
    %144 = arith.mulf %142, %143 : vector<8x256xf32>
    %145 = arith.addf %138, %144 : vector<8x256xf32>
    %c0_105 = arith.constant 0 : index
    %c0_106 = arith.constant 0 : index
    %c3_107 = arith.constant 3 : index
    %c0_108 = arith.constant 0 : index
    %146 = vector.load %arg1[%c0_105, %c0_106, %c3_107, %c0_108] : memref<1x4x4x256xf32, #tpu.memory_space<vmem>>, vector<1x1x1x256xf32>
    %147 = vector.shape_cast %146 : vector<1x1x1x256xf32> to vector<1x256xf32>
    %c0_109 = arith.constant 0 : index
    %c19 = arith.constant 19 : index
    %148 = vector.load %arg2[%c0_109, %c19] : memref<8x36xf32, #tpu.memory_space<vmem>>, vector<8x1xf32>
    %149 = vector.broadcast %148 : vector<8x1xf32> to vector<8x256xf32>
    %150 = vector.broadcast %147 : vector<1x256xf32> to vector<8x256xf32>
    %151 = arith.mulf %149, %150 : vector<8x256xf32>
    %152 = arith.addf %145, %151 : vector<8x256xf32>
    %c0_110 = arith.constant 0 : index
    %c2_111 = arith.constant 2 : index
    %c0_112 = arith.constant 0 : index
    %c0_113 = arith.constant 0 : index
    %153 = vector.load %arg4[%c0_110, %c2_111, %c0_112, %c0_113] : memref<1x4x8x256xf32, #tpu.memory_space<vmem>>, vector<1x1x8x256xf32>
    %154 = vector.shape_cast %153 : vector<1x1x8x256xf32> to vector<8x256xf32>
    %155 = vector.shape_cast %152 : vector<8x256xf32> to vector<1x1x8x256xf32>
    tpu.vector_store %arg4[%c0_110, %c2_111, %c0_112, %c0_113], %155 {strides = array<i32>} : memref<1x4x8x256xf32, #tpu.memory_space<vmem>>, vector<1x1x8x256xf32>,
    %156 = vector.shape_cast %0 : vector<8x1xf32> to vector<8x1xf32>
    %157 = vector.broadcast %156 : vector<8x1xf32> to vector<8x256xf32>
    %c0_114 = arith.constant 0 : index
    %c3_115 = arith.constant 3 : index
    %c0_116 = arith.constant 0 : index
    %c0_117 = arith.constant 0 : index
    %158 = vector.load %arg1[%c0_114, %c3_115, %c0_116, %c0_117] : memref<1x4x4x256xf32, #tpu.memory_space<vmem>>, vector<1x1x1x256xf32>
    %159 = vector.shape_cast %158 : vector<1x1x1x256xf32> to vector<1x256xf32>
    %c0_118 = arith.constant 0 : index
    %c20 = arith.constant 20 : index
    %160 = vector.load %arg2[%c0_118, %c20] : memref<8x36xf32, #tpu.memory_space<vmem>>, vector<8x1xf32>
    %161 = vector.broadcast %160 : vector<8x1xf32> to vector<8x256xf32>
    %162 = vector.broadcast %159 : vector<1x256xf32> to vector<8x256xf32>
    %163 = arith.mulf %161, %162 : vector<8x256xf32>
    %164 = arith.addf %157, %163 : vector<8x256xf32>
    %c0_119 = arith.constant 0 : index
    %c3_120 = arith.constant 3 : index
    %c1_121 = arith.constant 1 : index
    %c0_122 = arith.constant 0 : index
    %165 = vector.load %arg1[%c0_119, %c3_120, %c1_121, %c0_122] : memref<1x4x4x256xf32, #tpu.memory_space<vmem>>, vector<1x1x1x256xf32>
    %166 = vector.shape_cast %165 : vector<1x1x1x256xf32> to vector<1x256xf32>
    %c0_123 = arith.constant 0 : index
    %c21 = arith.constant 21 : index
    %167 = vector.load %arg2[%c0_123, %c21] : memref<8x36xf32, #tpu.memory_space<vmem>>, vector<8x1xf32>
    %168 = vector.broadcast %167 : vector<8x1xf32> to vector<8x256xf32>
    %169 = vector.broadcast %166 : vector<1x256xf32> to vector<8x256xf32>
    %170 = arith.mulf %168, %169 : vector<8x256xf32>
    %171 = arith.addf %164, %170 : vector<8x256xf32>
    %c0_124 = arith.constant 0 : index
    %c3_125 = arith.constant 3 : index
    %c2_126 = arith.constant 2 : index
    %c0_127 = arith.constant 0 : index
    %172 = vector.load %arg1[%c0_124, %c3_125, %c2_126, %c0_127] : memref<1x4x4x256xf32, #tpu.memory_space<vmem>>, vector<1x1x1x256xf32>
    %173 = vector.shape_cast %172 : vector<1x1x1x256xf32> to vector<1x256xf32>
    %c0_128 = arith.constant 0 : index
    %c22 = arith.constant 22 : index
    %174 = vector.load %arg2[%c0_128, %c22] : memref<8x36xf32, #tpu.memory_space<vmem>>, vector<8x1xf32>
    %175 = vector.broadcast %174 : vector<8x1xf32> to vector<8x256xf32>
    %176 = vector.broadcast %173 : vector<1x256xf32> to vector<8x256xf32>
    %177 = arith.mulf %175, %176 : vector<8x256xf32>
    %178 = arith.addf %171, %177 : vector<8x256xf32>
    %c0_129 = arith.constant 0 : index
    %c3_130 = arith.constant 3 : index
    %c3_131 = arith.constant 3 : index
    %c0_132 = arith.constant 0 : index
    %179 = vector.load %arg1[%c0_129, %c3_130, %c3_131, %c0_132] : memref<1x4x4x256xf32, #tpu.memory_space<vmem>>, vector<1x1x1x256xf32>
    %180 = vector.shape_cast %179 : vector<1x1x1x256xf32> to vector<1x256xf32>
    %c0_133 = arith.constant 0 : index
    %c23 = arith.constant 23 : index
    %181 = vector.load %arg2[%c0_133, %c23] : memref<8x36xf32, #tpu.memory_space<vmem>>, vector<8x1xf32>
    %182 = vector.broadcast %181 : vector<8x1xf32> to vector<8x256xf32>
    %183 = vector.broadcast %180 : vector<1x256xf32> to vector<8x256xf32>
    %184 = arith.mulf %182, %183 : vector<8x256xf32>
    %185 = arith.addf %178, %184 : vector<8x256xf32>
    %c0_134 = arith.constant 0 : index
    %c2_135 = arith.constant 2 : index
    %c0_136 = arith.constant 0 : index
    %c0_137 = arith.constant 0 : index
    %186 = vector.load %arg1[%c0_134, %c2_135, %c0_136, %c0_137] : memref<1x4x4x256xf32, #tpu.memory_space<vmem>>, vector<1x1x1x256xf32>
    %187 = vector.shape_cast %186 : vector<1x1x1x256xf32> to vector<1x256xf32>
    %c0_138 = arith.constant 0 : index
    %c24 = arith.constant 24 : index
    %188 = vector.load %arg2[%c0_138, %c24] : memref<8x36xf32, #tpu.memory_space<vmem>>, vector<8x1xf32>
    %189 = vector.broadcast %188 : vector<8x1xf32> to vector<8x256xf32>
    %190 = vector.broadcast %187 : vector<1x256xf32> to vector<8x256xf32>
    %191 = arith.mulf %189, %190 : vector<8x256xf32>
    %192 = arith.addf %185, %191 : vector<8x256xf32>
    %c0_139 = arith.constant 0 : index
    %c2_140 = arith.constant 2 : index
    %c1_141 = arith.constant 1 : index
    %c0_142 = arith.constant 0 : index
    %193 = vector.load %arg1[%c0_139, %c2_140, %c1_141, %c0_142] : memref<1x4x4x256xf32, #tpu.memory_space<vmem>>, vector<1x1x1x256xf32>
    %194 = vector.shape_cast %193 : vector<1x1x1x256xf32> to vector<1x256xf32>
    %c0_143 = arith.constant 0 : index
    %c25 = arith.constant 25 : index
    %195 = vector.load %arg2[%c0_143, %c25] : memref<8x36xf32, #tpu.memory_space<vmem>>, vector<8x1xf32>
    %196 = vector.broadcast %195 : vector<8x1xf32> to vector<8x256xf32>
    %197 = vector.broadcast %194 : vector<1x256xf32> to vector<8x256xf32>
    %198 = arith.mulf %196, %197 : vector<8x256xf32>
    %199 = arith.addf %192, %198 : vector<8x256xf32>
    %c0_144 = arith.constant 0 : index
    %c2_145 = arith.constant 2 : index
    %c2_146 = arith.constant 2 : index
    %c0_147 = arith.constant 0 : index
    %200 = vector.load %arg1[%c0_144, %c2_145, %c2_146, %c0_147] : memref<1x4x4x256xf32, #tpu.memory_space<vmem>>, vector<1x1x1x256xf32>
    %201 = vector.shape_cast %200 : vector<1x1x1x256xf32> to vector<1x256xf32>
    %c0_148 = arith.constant 0 : index
    %c26 = arith.constant 26 : index
    %202 = vector.load %arg2[%c0_148, %c26] : memref<8x36xf32, #tpu.memory_space<vmem>>, vector<8x1xf32>
    %203 = vector.broadcast %202 : vector<8x1xf32> to vector<8x256xf32>
    %204 = vector.broadcast %201 : vector<1x256xf32> to vector<8x256xf32>
    %205 = arith.mulf %203, %204 : vector<8x256xf32>
    %206 = arith.addf %199, %205 : vector<8x256xf32>
    %c0_149 = arith.constant 0 : index
    %c2_150 = arith.constant 2 : index
    %c3_151 = arith.constant 3 : index
    %c0_152 = arith.constant 0 : index
    %207 = vector.load %arg1[%c0_149, %c2_150, %c3_151, %c0_152] : memref<1x4x4x256xf32, #tpu.memory_space<vmem>>, vector<1x1x1x256xf32>
    %208 = vector.shape_cast %207 : vector<1x1x1x256xf32> to vector<1x256xf32>
    %c0_153 = arith.constant 0 : index
    %c27 = arith.constant 27 : index
    %209 = vector.load %arg2[%c0_153, %c27] : memref<8x36xf32, #tpu.memory_space<vmem>>, vector<8x1xf32>
    %210 = vector.broadcast %209 : vector<8x1xf32> to vector<8x256xf32>
    %211 = vector.broadcast %208 : vector<1x256xf32> to vector<8x256xf32>
    %212 = arith.mulf %210, %211 : vector<8x256xf32>
    %213 = arith.addf %206, %212 : vector<8x256xf32>
    %c0_154 = arith.constant 0 : index
    %c1_155 = arith.constant 1 : index
    %c0_156 = arith.constant 0 : index
    %c0_157 = arith.constant 0 : index
    %214 = vector.load %arg1[%c0_154, %c1_155, %c0_156, %c0_157] : memref<1x4x4x256xf32, #tpu.memory_space<vmem>>, vector<1x1x1x256xf32>
    %215 = vector.shape_cast %214 : vector<1x1x1x256xf32> to vector<1x256xf32>
    %c0_158 = arith.constant 0 : index
    %c28 = arith.constant 28 : index
    %216 = vector.load %arg2[%c0_158, %c28] : memref<8x36xf32, #tpu.memory_space<vmem>>, vector<8x1xf32>
    %217 = vector.broadcast %216 : vector<8x1xf32> to vector<8x256xf32>
    %218 = vector.broadcast %215 : vector<1x256xf32> to vector<8x256xf32>
    %219 = arith.mulf %217, %218 : vector<8x256xf32>
    %220 = arith.addf %213, %219 : vector<8x256xf32>
    %c0_159 = arith.constant 0 : index
    %c1_160 = arith.constant 1 : index
    %c1_161 = arith.constant 1 : index
    %c0_162 = arith.constant 0 : index
    %221 = vector.load %arg1[%c0_159, %c1_160, %c1_161, %c0_162] : memref<1x4x4x256xf32, #tpu.memory_space<vmem>>, vector<1x1x1x256xf32>
    %222 = vector.shape_cast %221 : vector<1x1x1x256xf32> to vector<1x256xf32>
    %c0_163 = arith.constant 0 : index
    %c29 = arith.constant 29 : index
    %223 = vector.load %arg2[%c0_163, %c29] : memref<8x36xf32, #tpu.memory_space<vmem>>, vector<8x1xf32>
    %224 = vector.broadcast %223 : vector<8x1xf32> to vector<8x256xf32>
    %225 = vector.broadcast %222 : vector<1x256xf32> to vector<8x256xf32>
    %226 = arith.mulf %224, %225 : vector<8x256xf32>
    %227 = arith.addf %220, %226 : vector<8x256xf32>
    %c0_164 = arith.constant 0 : index
    %c1_165 = arith.constant 1 : index
    %c2_166 = arith.constant 2 : index
    %c0_167 = arith.constant 0 : index
    %228 = vector.load %arg1[%c0_164, %c1_165, %c2_166, %c0_167] : memref<1x4x4x256xf32, #tpu.memory_space<vmem>>, vector<1x1x1x256xf32>
    %229 = vector.shape_cast %228 : vector<1x1x1x256xf32> to vector<1x256xf32>
    %c0_168 = arith.constant 0 : index
    %c30 = arith.constant 30 : index
    %230 = vector.load %arg2[%c0_168, %c30] : memref<8x36xf32, #tpu.memory_space<vmem>>, vector<8x1xf32>
    %231 = vector.broadcast %230 : vector<8x1xf32> to vector<8x256xf32>
    %232 = vector.broadcast %229 : vector<1x256xf32> to vector<8x256xf32>
    %233 = arith.mulf %231, %232 : vector<8x256xf32>
    %234 = arith.addf %227, %233 : vector<8x256xf32>
    %c0_169 = arith.constant 0 : index
    %c1_170 = arith.constant 1 : index
    %c3_171 = arith.constant 3 : index
    %c0_172 = arith.constant 0 : index
    %235 = vector.load %arg1[%c0_169, %c1_170, %c3_171, %c0_172] : memref<1x4x4x256xf32, #tpu.memory_space<vmem>>, vector<1x1x1x256xf32>
    %236 = vector.shape_cast %235 : vector<1x1x1x256xf32> to vector<1x256xf32>
    %c0_173 = arith.constant 0 : index
    %c31 = arith.constant 31 : index
    %237 = vector.load %arg2[%c0_173, %c31] : memref<8x36xf32, #tpu.memory_space<vmem>>, vector<8x1xf32>
    %238 = vector.broadcast %237 : vector<8x1xf32> to vector<8x256xf32>
    %239 = vector.broadcast %236 : vector<1x256xf32> to vector<8x256xf32>
    %240 = arith.mulf %238, %239 : vector<8x256xf32>
    %241 = arith.addf %234, %240 : vector<8x256xf32>
    %c0_174 = arith.constant 0 : index
    %c0_175 = arith.constant 0 : index
    %c0_176 = arith.constant 0 : index
    %c0_177 = arith.constant 0 : index
    %242 = vector.load %arg1[%c0_174, %c0_175, %c0_176, %c0_177] : memref<1x4x4x256xf32, #tpu.memory_space<vmem>>, vector<1x1x1x256xf32>
    %243 = vector.shape_cast %242 : vector<1x1x1x256xf32> to vector<1x256xf32>
    %c0_178 = arith.constant 0 : index
    %c32 = arith.constant 32 : index
    %244 = vector.load %arg2[%c0_178, %c32] : memref<8x36xf32, #tpu.memory_space<vmem>>, vector<8x1xf32>
    %245 = vector.broadcast %244 : vector<8x1xf32> to vector<8x256xf32>
    %246 = vector.broadcast %243 : vector<1x256xf32> to vector<8x256xf32>
    %247 = arith.mulf %245, %246 : vector<8x256xf32>
    %248 = arith.addf %241, %247 : vector<8x256xf32>
    %c0_179 = arith.constant 0 : index
    %c0_180 = arith.constant 0 : index
    %c1_181 = arith.constant 1 : index
    %c0_182 = arith.constant 0 : index
    %249 = vector.load %arg1[%c0_179, %c0_180, %c1_181, %c0_182] : memref<1x4x4x256xf32, #tpu.memory_space<vmem>>, vector<1x1x1x256xf32>
    %250 = vector.shape_cast %249 : vector<1x1x1x256xf32> to vector<1x256xf32>
    %c0_183 = arith.constant 0 : index
    %c33 = arith.constant 33 : index
    %251 = vector.load %arg2[%c0_183, %c33] : memref<8x36xf32, #tpu.memory_space<vmem>>, vector<8x1xf32>
    %252 = vector.broadcast %251 : vector<8x1xf32> to vector<8x256xf32>
    %253 = vector.broadcast %250 : vector<1x256xf32> to vector<8x256xf32>
    %254 = arith.mulf %252, %253 : vector<8x256xf32>
    %255 = arith.addf %248, %254 : vector<8x256xf32>
    %c0_184 = arith.constant 0 : index
    %c0_185 = arith.constant 0 : index
    %c2_186 = arith.constant 2 : index
    %c0_187 = arith.constant 0 : index
    %256 = vector.load %arg1[%c0_184, %c0_185, %c2_186, %c0_187] : memref<1x4x4x256xf32, #tpu.memory_space<vmem>>, vector<1x1x1x256xf32>
    %257 = vector.shape_cast %256 : vector<1x1x1x256xf32> to vector<1x256xf32>
    %c0_188 = arith.constant 0 : index
    %c34 = arith.constant 34 : index
    %258 = vector.load %arg2[%c0_188, %c34] : memref<8x36xf32, #tpu.memory_space<vmem>>, vector<8x1xf32>
    %259 = vector.broadcast %258 : vector<8x1xf32> to vector<8x256xf32>
    %260 = vector.broadcast %257 : vector<1x256xf32> to vector<8x256xf32>
    %261 = arith.mulf %259, %260 : vector<8x256xf32>
    %262 = arith.addf %255, %261 : vector<8x256xf32>
    %c0_189 = arith.constant 0 : index
    %c0_190 = arith.constant 0 : index
    %c3_191 = arith.constant 3 : index
    %c0_192 = arith.constant 0 : index
    %263 = vector.load %arg1[%c0_189, %c0_190, %c3_191, %c0_192] : memref<1x4x4x256xf32, #tpu.memory_space<vmem>>, vector<1x1x1x256xf32>
    %264 = vector.shape_cast %263 : vector<1x1x1x256xf32> to vector<1x256xf32>
    %c0_193 = arith.constant 0 : index
    %c35 = arith.constant 35 : index
    %265 = vector.load %arg2[%c0_193, %c35] : memref<8x36xf32, #tpu.memory_space<vmem>>, vector<8x1xf32>
    %266 = vector.broadcast %265 : vector<8x1xf32> to vector<8x256xf32>
    %267 = vector.broadcast %264 : vector<1x256xf32> to vector<8x256xf32>
    %268 = arith.mulf %266, %267 : vector<8x256xf32>
    %269 = arith.addf %262, %268 : vector<8x256xf32>
    %c0_194 = arith.constant 0 : index
    %c3_195 = arith.constant 3 : index
    %c0_196 = arith.constant 0 : index
    %c0_197 = arith.constant 0 : index
    %270 = vector.load %arg4[%c0_194, %c3_195, %c0_196, %c0_197] : memref<1x4x8x256xf32, #tpu.memory_space<vmem>>, vector<1x1x8x256xf32>
    %271 = vector.shape_cast %270 : vector<1x1x8x256xf32> to vector<8x256xf32>
    %272 = vector.shape_cast %269 : vector<8x256xf32> to vector<1x1x8x256xf32>
    tpu.vector_store %arg4[%c0_194, %c3_195, %c0_196, %c0_197], %272 {strides = array<i32>} : memref<1x4x8x256xf32, #tpu.memory_space<vmem>>, vector<1x1x8x256xf32>,
    return
  }
  func.func @transform_0(%arg0: i32) -> (i32, i32, i32, i32) {
    %c0_i32 = arith.constant 0 : i32
    %c0_i32_0 = arith.constant 0 : i32
    %c0_i32_1 = arith.constant 0 : i32
    %c0_i32_2 = arith.constant 0 : i32
    return %arg0, %c0_i32, %c0_i32_0, %c0_i32_1 : i32, i32, i32, i32
  }
  func.func @transform_1(%arg0: i32) -> (i32, i32) {
    %c0_i32 = arith.constant 0 : i32
    %c0_i32_0 = arith.constant 0 : i32
    %c0_i32_1 = arith.constant 0 : i32
    return %c0_i32, %c0_i32_0 : i32, i32
  }
  func.func @transform_2(%arg0: i32) -> (i32, i32) {
    %c0_i32 = arith.constant 0 : i32
    %c0_i32_0 = arith.constant 0 : i32
    %c0_i32_1 = arith.constant 0 : i32
    return %c0_i32, %c0_i32_0 : i32, i32
  }
  func.func @transform_3(%arg0: i32) -> (i32, i32, i32, i32) {
    %c0_i32 = arith.constant 0 : i32
    %c0_i32_0 = arith.constant 0 : i32
    %c0_i32_1 = arith.constant 0 : i32
    %c0_i32_2 = arith.constant 0 : i32
    return %arg0, %c0_i32, %c0_i32_0, %c0_i32_1 : i32, i32, i32, i32
  }
}

</mosaic_0001>

<llo_original>
// kernel: tpu_custom_call.1
$region0: #{tpu_custom_call.1}
  #allocation0 [shape = 'u32[]', space=smem, size = 0x4, offset = 0x4, fixed_abs, tag = 'smem constant byte address 0x4 - core index']
  #allocation1 [shape = 'u32[72,128]{1,0:T(1,128)}', space=vmem, size = 0x9000, scoped, tag = 'internal scratch']
  %s0 = inlined_call_operand.hbm [shape: f32[2,4,4,256], index: 0, kind: input, shape index: {}]
  %s1 = inlined_call_operand.vmem [shape: f32[8,36], index: 1, kind: input, shape index: {}]
  %s2 = inlined_call_operand.vmem [shape: f32[8,1], index: 2, kind: input, shape index: {}]
  %s3 = inlined_call_operand.hbm [shape: f32[2,4,8,256], index: 3, kind: output, shape index: {}]
  %s4 = sld [smem:[#allocation0]]
  $region49: #{tpu_custom_call.1} parent=0
    _
  %s6 = ssub.s32 1, %s4
  %s7 = scalar_select 0, %s6, %s4
  $region1: #{tpu_custom_call.1} parent=0
    #allocation2 [shape = 'u8[32768]{0}', space=vmem, size = 0x8000, scoped, tag = 'input window, operand 0']
    #allocation3 [shape = 's32[2]{0}', space=sflag, size = 0x8, scoped, tag = 'scoped memory for tpu_custom_call.1']
    #allocation4 [shape = 's32[2]{0}', space=sflag, size = 0x8, scoped, tag = 'scoped memory for tpu_custom_call.1']
    #allocation5 [shape = 'u8[65536]{0}', space=vmem, size = 0x10000, scoped, tag = 'output window, operand 0']
    %8 = vsyncpa [#allocation3], 0
    %s9 = scalar_lea.sflag [#allocation3], 1
    %10 = vsyncpa %s9, 0
    %11 = vsyncpa [#allocation4], 0
    %s12 = scalar_lea.sflag [#allocation4], 1
    %13 = vsyncpa %s12, 0
    loop: start=0, step=1, limit=4
    $region2: #{tpu_custom_call.1} parent=1 // loop_pre_header
      _
    $region3: #{tpu_custom_call.1} parent=1 // loop_header
      %s15 = sphi 0, %s19
      %p16 = scmp.ge.s32.totalorder %s15, 4
      %s25 = sphi 0, %s27
      %s28 = sphi 0, %s25
      %s29 = sphi 0, %s28
      %s45 = sphi 0, %s29
      %s49 = sphi 0, %s49
      %s51 = sphi 0, %s49
      %s52 = sphi 0, %s51
      %s66 = sphi 0, %s52
      %s70 = sphi 0, %s70
      %s72 = sphi 0, %s70
      %s73 = sphi 0, %s72
      %s87 = sphi 0, %s73
      %s93 = sphi 0, %s95
      %s96 = sphi 0, %s93
      %s97 = sphi 0, %s96
      %s113 = sphi 0, %s97
    $region4: #{tpu_custom_call.1} parent=1 // loop_header_branch
      %18 = sbr.rel (%p16) target = $region8
    $region5: #{tpu_custom_call.1} parent=1 // loop_body
      %s20 = ssub.s32 %s15, 1
      %s21 = ssub.s32 %s15, 2
      %s22 = sadd.s32 %s15, 1
      %s23 = ssub.s32 %s15, %s22
      %p24 = scmp.eq.s32.totalorder %s23, 0
      %s26 = sadd.s32 %s25, 1
      %s27 = scalar_select %p24, %s25, %s26
      %p30 = pneg %p24
      %p31 = scmp.eq.s32.totalorder %s15, 1
      %p32 = por %p30, %p31
      %p33 = scmp.ne.s32.totalorder %s25, %s28
      %p34 = scmp.eq.s32.totalorder %s15, 0
      %p35 = por %p33, %p34
      %p36 = scmp.ne.s32.totalorder %s25, %s28
      %p37 = scmp.eq.s32.totalorder %s20, 1
      %p38 = por %p36, %p37
      %p39 = scmp.ne.s32.totalorder %s28, %s29
      %p40 = scmp.eq.s32.totalorder %s20, 0
      %p41 = por %p39, %p40
      %p42 = scmp.ne.s32.totalorder %s28, %s29
      %p43 = scmp.eq.s32.totalorder %s21, 1
      %p44 = por %p42, %p43
      %p46 = scmp.ne.s32.totalorder %s29, %s45
      %p47 = scmp.eq.s32.totalorder %s21, 0
      %p48 = por %p46, %p47
      %s50 = sadd.s32 %s49, 1
      %p53 = scmp.eq.s32.totalorder %s15, 1
      %p54 = scmp.ne.s32.totalorder %s49, %s51
      %p55 = scmp.eq.s32.totalorder %s15, 0
      %p56 = por %p54, %p55
      %p57 = scmp.ne.s32.totalorder %s49, %s51
      %p58 = scmp.eq.s32.totalorder %s20, 1
      %p59 = por %p57, %p58
      %p60 = scmp.ne.s32.totalorder %s51, %s52
      %p61 = scmp.eq.s32.totalorder %s20, 0
      %p62 = por %p60, %p61
      %p63 = scmp.ne.s32.totalorder %s51, %s52
      %p64 = scmp.eq.s32.totalorder %s21, 1
      %p65 = por %p63, %p64
      %p67 = scmp.ne.s32.totalorder %s52, %s66
      %p68 = scmp.eq.s32.totalorder %s21, 0
      %p69 = por %p67, %p68
      %s71 = sadd.s32 %s70, 1
      %p74 = scmp.eq.s32.totalorder %s15, 1
      %p75 = scmp.ne.s32.totalorder %s70, %s72
      %p76 = scmp.eq.s32.totalorder %s15, 0
      %p77 = por %p75, %p76
      %p78 = scmp.ne.s32.totalorder %s70, %s72
      %p79 = scmp.eq.s32.totalorder %s20, 1
      %p80 = por %p78, %p79
      %p81 = scmp.ne.s32.totalorder %s72, %s73
      %p82 = scmp.eq.s32.totalorder %s20, 0
      %p83 = por %p81, %p82
      %p84 = scmp.ne.s32.totalorder %s72, %s73
      %p85 = scmp.eq.s32.totalorder %s21, 1
      %p86 = por %p84, %p85
      %p88 = scmp.ne.s32.totalorder %s73, %s87
      %p89 = scmp.eq.s32.totalorder %s21, 0
      %p90 = por %p88, %p89
      %s91 = ssub.s32 %s15, %s22
      %p92 = scmp.eq.s32.totalorder %s91, 0
      %s94 = sadd.s32 %s93, 1
      %s95 = scalar_select %p92, %s93, %s94
      %p98 = pneg %p92
      %p99 = scmp.eq.s32.totalorder %s15, 1
      %p100 = por %p98, %p99
      %p101 = scmp.ne.s32.totalorder %s93, %s96
      %p102 = scmp.eq.s32.totalorder %s15, 0
      %p103 = por %p101, %p102
      %p104 = scmp.ne.s32.totalorder %s93, %s96
      %p105 = scmp.eq.s32.totalorder %s20, 1
      %p106 = por %p104, %p105
      %p107 = scmp.ne.s32.totalorder %s96, %s97
      %p108 = scmp.eq.s32.totalorder %s20, 0
      %p109 = por %p107, %p108
      %p110 = scmp.ne.s32.totalorder %s96, %s97
      %p111 = scmp.eq.s32.totalorder %s21, 1
      %p112 = por %p110, %p111
      %p114 = scmp.ne.s32.totalorder %s97, %s113
      %p115 = scmp.eq.s32.totalorder %s21, 0
      %p116 = por %p114, %p115
      %p117 = scmp.le.s32.totalorder 1, %s15
      %p118 = scmp.lt.s32.totalorder %s15, 3
      %p119 = pnand %p117, %p118
      %p120 = pneg %p119
      // Predicated region
      $region9: #{tpu_custom_call.1} parent=5 // pred_check
        _
      $region10: #{tpu_custom_call.1} parent=5 // pred_check_branch
        %122 = sbr.rel (%p119) target = $region12
      $region11: #{tpu_custom_call.1} parent=5 // pred_region
        %s123 = ssub.s32 %s15, 1
        // Predicated region
        $region13: #{tpu_custom_call.1} parent=11 // pred_check
          %p124 = pneg %p62
        $region14: #{tpu_custom_call.1} parent=11 // pred_check_branch
          %126 = sbr.rel (%p124) target = $region16
        $region15: #{tpu_custom_call.1} parent=11 // pred_region
          _
        $region16: #{tpu_custom_call.1} parent=11 // pred_fallthru
          _
        // Predicated region
        $region17: #{tpu_custom_call.1} parent=11 // pred_check
          %p127 = pneg %p83
        $region18: #{tpu_custom_call.1} parent=11 // pred_check_branch
          %129 = sbr.rel (%p127) target = $region20
        $region19: #{tpu_custom_call.1} parent=11 // pred_region
          _
        $region20: #{tpu_custom_call.1} parent=11 // pred_fallthru
          _
      $region12: #{tpu_custom_call.1} parent=5 // pred_fallthru
        _
      %p130 = scmp.lt.s32.totalorder %s15, 2
      // Predicated region
      $region21: #{tpu_custom_call.1} parent=5 // pred_check
        %p131 = pneg %p130
      $region22: #{tpu_custom_call.1} parent=5 // pred_check_branch
        %133 = sbr.rel (%p131) target = $region24
      $region23: #{tpu_custom_call.1} parent=5 // pred_region
        // Predicated region
        $region25: #{tpu_custom_call.1} parent=23 // pred_check
          %p134 = pneg %p35
        $region26: #{tpu_custom_call.1} parent=23 // pred_check_branch
          %136 = sbr.rel (%p134) target = $region28
        $region27: #{tpu_custom_call.1} parent=23 // pred_region
          %s137 = sand.u32 %s25, 1
          %s138 = scalar_lea.sflag [#allocation3], %s137
          %s139 = sand.u32 %s25, 1
          %s140 = smul.addr %s139, 32
          %s141 = scalar_lea.vmem [#allocation2], %s140
          %143 = vsyncadd %s138, 0
          %s144 = smul.addr %s15, 8
          %s145 = smul.addr %s144, 4
          %s146 = scalar_lea.hbm %s0, %s145
          %s147 = sshll.u32 %s146, 4
          %s148 = int_to_ptr.hbm [resolvable:$true] %s147
          %s149 = sshll.u32 %s141, 4
          %s150 = int_to_ptr.vmem [resolvable:$true] %s149
          %155 = dma.hbm_to_vmem [thread:$0]  %s148, 512, %s150, %s138, 128, 128, 8
        $region28: #{tpu_custom_call.1} parent=23 // pred_fallthru
          _
      $region24: #{tpu_custom_call.1} parent=5 // pred_fallthru
        _
      %p156 = scmp.le.s32.totalorder 1, %s15
      %p157 = scmp.lt.s32.totalorder %s15, 3
      %p158 = pnand %p156, %p157
      %p159 = pneg %p158
      // Predicated region
      $region29: #{tpu_custom_call.1} parent=5 // pred_check
        _
      $region30: #{tpu_custom_call.1} parent=5 // pred_check_branch
        %161 = sbr.rel (%p158) target = $region32
      $region31: #{tpu_custom_call.1} parent=5 // pred_region
        %s162 = ssub.s32 %s15, 1
        %s163 = sand.u32 %s28, 1
        %s164 = scalar_lea.sflag [#allocation3], %s163
        %s165 = sand.u32 %s28, 1
        %s166 = smul.addr %s165, 32
        %s167 = scalar_lea.vmem [#allocation2], %s166
        // Predicated region
        $region33: #{tpu_custom_call.1} parent=31 // pred_check
          %p168 = pneg %p41
        $region34: #{tpu_custom_call.1} parent=31 // pred_check_branch
          %170 = sbr.rel (%p168) target = $region36
        $region35: #{tpu_custom_call.1} parent=31 // pred_region
          %172 = dma.done %s164, 512
        $region36: #{tpu_custom_call.1} parent=31 // pred_fallthru
          _
        %s173 = sand.u32 %s28, 1
        %s174 = scalar_lea.sflag [#allocation3], %s173
        %s175 = sand.u32 %s28, 1
        %s176 = smul.addr %s175, 32
        %s177 = scalar_lea.vmem [#allocation2], %s176
        %p178 = pneg %p41
        %p179 = pneg %p38
        %p180 = pneg %p62
        %p181 = pneg %p59
        %p182 = pneg %p83
        %p183 = pneg %p80
        %p184 = pneg %p109
        %p185 = pneg %p106
        %s186 = sand.u32 %s96, 1
        %s187 = scalar_lea.sflag [#allocation4], %s186
        %s188 = sand.u32 %s96, 1
        %s189 = smul.addr %s188, 64
        %s190 = scalar_lea.vmem [#allocation5], %s189
        %v191 = vld [vmem:[%s2] sm:$0xff]
        %193 = vset.pattern.permute.xlu0 0
        %194 = vperm.xlu0 %193, %v191
        %v195 = vpop.permute.xlu0 %194
        %v197 = vld [vmem:[%s167] ss:$4 sm:$0x3]
        %v198 = vld [vmem:[%s1] sm:$0xff]
        %200 = vset.pattern.permute.xlu0 0
        %201 = vperm.xlu0 %200, %v198
        %v202 = vpop.permute.xlu0 %201
        %v205 = vperm.slane %v197, 0
        %v206 = vperm.slane %v197, 1
        %v209 = vmul.f32 %v202, %v205
        %v210 = vmul.f32 %v202, %v206
        %v211 = vadd.f32 %v195, %v209
        %v212 = vadd.f32 %v195, %v210
        %s213 = scalar_lea.vmem %s167, 1 [#allocation2]
        %v214 = vld [vmem:[%s213] ss:$4 sm:$0x3]
        %215 = vset.pattern.permute.xlu0 1
        %216 = vperm.xlu0 %215, %v198
        %v217 = vpop.permute.xlu0 %216
        %v220 = vperm.slane %v214, 0
        %v221 = vperm.slane %v214, 1
        %v224 = vmul.f32 %v217, %v220
        %v225 = vmul.f32 %v217, %v221
        %v226 = vadd.f32 %v211, %v224
        %v227 = vadd.f32 %v212, %v225
        %s228 = scalar_lea.vmem %s167, 2 [#allocation2]
        %v229 = vld [vmem:[%s228] ss:$4 sm:$0x3]
        %230 = vset.pattern.permute.xlu0 2
        %231 = vperm.xlu0 %230, %v198
        %v232 = vpop.permute.xlu0 %231
        %v235 = vperm.slane %v229, 0
        %v236 = vperm.slane %v229, 1
        %v239 = vmul.f32 %v232, %v235
        %v240 = vmul.f32 %v232, %v236
        %v241 = vadd.f32 %v226, %v239
        %v242 = vadd.f32 %v227, %v240
        %s243 = scalar_lea.vmem %s167, 3 [#allocation2]
        %v244 = vld [vmem:[%s243] ss:$4 sm:$0x3]
        %245 = vset.pattern.permute.xlu0 3
        %246 = vperm.xlu0 %245, %v198
        %v247 = vpop.permute.xlu0 %246
        %v250 = vperm.slane %v244, 0
        %v251 = vperm.slane %v244, 1
        %v254 = vmul.f32 %v247, %v250
        %v255 = vmul.f32 %v247, %v251
        %v256 = vadd.f32 %v241, %v254
        %v257 = vadd.f32 %v242, %v255
        %258 = vst [vmem:[%s190] sm:$0xff] %v256
        %259 = vst [vmem:[%s190 + $0x8] sm:$0xff] %v257
        %s260 = scalar_lea.vmem %s167, 8 [#allocation2]
        %v261 = vld [vmem:[%s260] ss:$4 sm:$0x3]
        %v262 = vld [vmem:[%s1] sm:$0xff]
        %264 = vset.pattern.permute.xlu0 4
        %265 = vperm.xlu0 %264, %v262
        %v266 = vpop.permute.xlu0 %265
        %v269 = vperm.slane %v261, 0
        %v270 = vperm.slane %v261, 1
        %v273 = vmul.f32 %v266, %v269
        %v274 = vmul.f32 %v266, %v270
        %v275 = vadd.f32 %v195, %v273
        %v276 = vadd.f32 %v195, %v274
        %s277 = scalar_lea.vmem %s260, 1 [#allocation2]
        %v278 = vld [vmem:[%s277] ss:$4 sm:$0x3]
        %279 = vset.pattern.permute.xlu0 5
        %280 = vperm.xlu0 %279, %v262
        %v281 = vpop.permute.xlu0 %280
        %v284 = vperm.slane %v278, 0
        %v285 = vperm.slane %v278, 1
        %v288 = vmul.f32 %v281, %v284
        %v289 = vmul.f32 %v281, %v285
        %v290 = vadd.f32 %v275, %v288
        %v291 = vadd.f32 %v276, %v289
        %s292 = scalar_lea.vmem %s260, 2 [#allocation2]
        %v293 = vld [vmem:[%s292] ss:$4 sm:$0x3]
        %294 = vset.pattern.permute.xlu0 6
        %295 = vperm.xlu0 %294, %v262
        %v296 = vpop.permute.xlu0 %295
        %v299 = vperm.slane %v293, 0
        %v300 = vperm.slane %v293, 1
        %v303 = vmul.f32 %v296, %v299
        %v304 = vmul.f32 %v296, %v300
        %v305 = vadd.f32 %v290, %v303
        %v306 = vadd.f32 %v291, %v304
        %s307 = scalar_lea.vmem %s260, 3 [#allocation2]
        %v308 = vld [vmem:[%s307] ss:$4 sm:$0x3]
        %309 = vset.pattern.permute.xlu0 7
        %310 = vperm.xlu0 %309, %v262
        %v311 = vpop.permute.xlu0 %310
        %v314 = vperm.slane %v308, 0
        %v315 = vperm.slane %v308, 1
        %v318 = vmul.f32 %v311, %v314
        %v319 = vmul.f32 %v311, %v315
        %v320 = vadd.f32 %v305, %v318
        %v321 = vadd.f32 %v306, %v319
        %v322 = vld [vmem:[%s167] ss:$4 sm:$0x3]
        %323 = vset.pattern.permute.xlu0 8
        %324 = vperm.xlu0 %323, %v262
        %v325 = vpop.permute.xlu0 %324
        %v328 = vperm.slane %v322, 0
        %v329 = vperm.slane %v322, 1
        %v332 = vmul.f32 %v325, %v328
        %v333 = vmul.f32 %v325, %v329
        %v334 = vadd.f32 %v320, %v332
        %v335 = vadd.f32 %v321, %v333
        %v336 = vld [vmem:[%s213] ss:$4 sm:$0x3]
        %337 = vset.pattern.permute.xlu0 9
        %338 = vperm.xlu0 %337, %v262
        %v339 = vpop.permute.xlu0 %338
        %v342 = vperm.slane %v336, 0
        %v343 = vperm.slane %v336, 1
        %v346 = vmul.f32 %v339, %v342
        %v347 = vmul.f32 %v339, %v343
        %v348 = vadd.f32 %v334, %v346
        %v349 = vadd.f32 %v335, %v347
        %v350 = vld [vmem:[%s228] ss:$4 sm:$0x3]
        %351 = vset.pattern.permute.xlu0 10
        %352 = vperm.xlu0 %351, %v262
        %v353 = vpop.permute.xlu0 %352
        %v356 = vperm.slane %v350, 0
        %v357 = vperm.slane %v350, 1
        %v360 = vmul.f32 %v353, %v356
        %v361 = vmul.f32 %v353, %v357
        %v362 = vadd.f32 %v348, %v360
        %v363 = vadd.f32 %v349, %v361
        %v364 = vld [vmem:[%s243] ss:$4 sm:$0x3]
        %365 = vset.pattern.permute.xlu0 11
        %366 = vperm.xlu0 %365, %v262
        %v367 = vpop.permute.xlu0 %366
        %v370 = vperm.slane %v364, 0
        %v371 = vperm.slane %v364, 1
        %v374 = vmul.f32 %v367, %v370
        %v375 = vmul.f32 %v367, %v371
        %v376 = vadd.f32 %v362, %v374
        %v377 = vadd.f32 %v363, %v375
        %s378 = scalar_lea.vmem %s190, 16 [#allocation5]
        %379 = vst [vmem:[%s378] sm:$0xff] %v376
        %380 = vst [vmem:[%s378 + $0x8] sm:$0xff] %v377
        %s381 = scalar_lea.vmem %s167, 16 [#allocation2]
        %v382 = vld [vmem:[%s381] ss:$4 sm:$0x3]
        %v383 = vld [vmem:[%s1] sm:$0xff]
        %385 = vset.pattern.permute.xlu0 12
        %386 = vperm.xlu0 %385, %v383
        %v387 = vpop.permute.xlu0 %386
        %v390 = vperm.slane %v382, 0
        %v391 = vperm.slane %v382, 1
        %v394 = vmul.f32 %v387, %v390
        %v395 = vmul.f32 %v387, %v391
        %v396 = vadd.f32 %v195, %v394
        %v397 = vadd.f32 %v195, %v395
        %s398 = scalar_lea.vmem %s381, 1 [#allocation2]
        %v399 = vld [vmem:[%s398] ss:$4 sm:$0x3]
        %400 = vset.pattern.permute.xlu0 13
        %401 = vperm.xlu0 %400, %v383
        %v402 = vpop.permute.xlu0 %401
        %v405 = vperm.slane %v399, 0
        %v406 = vperm.slane %v399, 1
        %v409 = vmul.f32 %v402, %v405
        %v410 = vmul.f32 %v402, %v406
        %v411 = vadd.f32 %v396, %v409
        %v412 = vadd.f32 %v397, %v410
        %s413 = scalar_lea.vmem %s381, 2 [#allocation2]
        %v414 = vld [vmem:[%s413] ss:$4 sm:$0x3]
        %415 = vset.pattern.permute.xlu0 14
        %416 = vperm.xlu0 %415, %v383
        %v417 = vpop.permute.xlu0 %416
        %v420 = vperm.slane %v414, 0
        %v421 = vperm.slane %v414, 1
        %v424 = vmul.f32 %v417, %v420
        %v425 = vmul.f32 %v417, %v421
        %v426 = vadd.f32 %v411, %v424
        %v427 = vadd.f32 %v412, %v425
        %s428 = scalar_lea.vmem %s381, 3 [#allocation2]
        %v429 = vld [vmem:[%s428] ss:$4 sm:$0x3]
        %430 = vset.pattern.permute.xlu0 15
        %431 = vperm.xlu0 %430, %v383
        %v432 = vpop.permute.xlu0 %431
        %v435 = vperm.slane %v429, 0
        %v436 = vperm.slane %v429, 1
        %v439 = vmul.f32 %v432, %v435
        %v440 = vmul.f32 %v432, %v436
        %v441 = vadd.f32 %v426, %v439
        %v442 = vadd.f32 %v427, %v440
        %v443 = vld [vmem:[%s167] ss:$4 sm:$0x3]
        %444 = vset.pattern.permute.xlu0 16
        %445 = vperm.xlu0 %444, %v383
        %v446 = vpop.permute.xlu0 %445
        %v449 = vperm.slane %v443, 0
        %v450 = vperm.slane %v443, 1
        %v453 = vmul.f32 %v446, %v449
        %v454 = vmul.f32 %v446, %v450
        %v455 = vadd.f32 %v441, %v453
        %v456 = vadd.f32 %v442, %v454
        %v457 = vld [vmem:[%s213] ss:$4 sm:$0x3]
        %458 = vset.pattern.permute.xlu0 17
        %459 = vperm.xlu0 %458, %v383
        %v460 = vpop.permute.xlu0 %459
        %v463 = vperm.slane %v457, 0
        %v464 = vperm.slane %v457, 1
        %v467 = vmul.f32 %v460, %v463
        %v468 = vmul.f32 %v460, %v464
        %v469 = vadd.f32 %v455, %v467
        %v470 = vadd.f32 %v456, %v468
        %v471 = vld [vmem:[%s228] ss:$4 sm:$0x3]
        %472 = vset.pattern.permute.xlu0 18
        %473 = vperm.xlu0 %472, %v383
        %v474 = vpop.permute.xlu0 %473
        %v477 = vperm.slane %v471, 0
        %v478 = vperm.slane %v471, 1
        %v481 = vmul.f32 %v474, %v477
        %v482 = vmul.f32 %v474, %v478
        %v483 = vadd.f32 %v469, %v481
        %v484 = vadd.f32 %v470, %v482
        %v485 = vld [vmem:[%s243] ss:$4 sm:$0x3]
        %486 = vset.pattern.permute.xlu0 19
        %487 = vperm.xlu0 %486, %v383
        %v488 = vpop.permute.xlu0 %487
        %v491 = vperm.slane %v485, 0
        %v492 = vperm.slane %v485, 1
        %v495 = vmul.f32 %v488, %v491
        %v496 = vmul.f32 %v488, %v492
        %v497 = vadd.f32 %v483, %v495
        %v498 = vadd.f32 %v484, %v496
        %s499 = scalar_lea.vmem %s190, 32 [#allocation5]
        %500 = vst [vmem:[%s499] sm:$0xff] %v497
        %501 = vst [vmem:[%s499 + $0x8] sm:$0xff] %v498
        %s502 = scalar_lea.vmem %s167, 24 [#allocation2]
        %v503 = vld [vmem:[%s502] ss:$4 sm:$0x3]
        %v504 = vld [vmem:[%s1] sm:$0xff]
        %506 = vset.pattern.permute.xlu0 20
        %507 = vperm.xlu0 %506, %v504
        %v508 = vpop.permute.xlu0 %507
        %v511 = vperm.slane %v503, 0
        %v512 = vperm.slane %v503, 1
        %v515 = vmul.f32 %v508, %v511
        %v516 = vmul.f32 %v508, %v512
        %v517 = vadd.f32 %v195, %v515
        %v518 = vadd.f32 %v195, %v516
        %s519 = scalar_lea.vmem %s502, 1 [#allocation2]
        %v520 = vld [vmem:[%s519] ss:$4 sm:$0x3]
        %521 = vset.pattern.permute.xlu0 21
        %522 = vperm.xlu0 %521, %v504
        %v523 = vpop.permute.xlu0 %522
        %v526 = vperm.slane %v520, 0
        %v527 = vperm.slane %v520, 1
        %v530 = vmul.f32 %v523, %v526
        %v531 = vmul.f32 %v523, %v527
        %v532 = vadd.f32 %v517, %v530
        %v533 = vadd.f32 %v518, %v531
        %s534 = scalar_lea.vmem %s502, 2 [#allocation2]
        %v535 = vld [vmem:[%s534] ss:$4 sm:$0x3]
        %536 = vset.pattern.permute.xlu0 22
        %537 = vperm.xlu0 %536, %v504
        %v538 = vpop.permute.xlu0 %537
        %v541 = vperm.slane %v535, 0
        %v542 = vperm.slane %v535, 1
        %v545 = vmul.f32 %v538, %v541
        %v546 = vmul.f32 %v538, %v542
        %v547 = vadd.f32 %v532, %v545
        %v548 = vadd.f32 %v533, %v546
        %s549 = scalar_lea.vmem %s502, 3 [#allocation2]
        %v550 = vld [vmem:[%s549] ss:$4 sm:$0x3]
        %551 = vset.pattern.permute.xlu0 23
        %552 = vperm.xlu0 %551, %v504
        %v553 = vpop.permute.xlu0 %552
        %v556 = vperm.slane %v550, 0
        %v557 = vperm.slane %v550, 1
        %v560 = vmul.f32 %v553, %v556
        %v561 = vmul.f32 %v553, %v557
        %v562 = vadd.f32 %v547, %v560
        %v563 = vadd.f32 %v548, %v561
        %v564 = vld [vmem:[%s381] ss:$4 sm:$0x3]
        %565 = vset.pattern.permute.xlu0 24
        %566 = vperm.xlu0 %565, %v504
        %v567 = vpop.permute.xlu0 %566
        %v570 = vperm.slane %v564, 0
        %v571 = vperm.slane %v564, 1
        %v574 = vmul.f32 %v567, %v570
        %v575 = vmul.f32 %v567, %v571
        %v576 = vadd.f32 %v562, %v574
        %v577 = vadd.f32 %v563, %v575
        %v578 = vld [vmem:[%s398] ss:$4 sm:$0x3]
        %579 = vset.pattern.permute.xlu0 25
        %580 = vperm.xlu0 %579, %v504
        %v581 = vpop.permute.xlu0 %580
        %v584 = vperm.slane %v578, 0
        %v585 = vperm.slane %v578, 1
        %v588 = vmul.f32 %v581, %v584
        %v589 = vmul.f32 %v581, %v585
        %v590 = vadd.f32 %v576, %v588
        %v591 = vadd.f32 %v577, %v589
        %v592 = vld [vmem:[%s413] ss:$4 sm:$0x3]
        %593 = vset.pattern.permute.xlu0 26
        %594 = vperm.xlu0 %593, %v504
        %v595 = vpop.permute.xlu0 %594
        %v598 = vperm.slane %v592, 0
        %v599 = vperm.slane %v592, 1
        %v602 = vmul.f32 %v595, %v598
        %v603 = vmul.f32 %v595, %v599
        %v604 = vadd.f32 %v590, %v602
        %v605 = vadd.f32 %v591, %v603
        %v606 = vld [vmem:[%s428] ss:$4 sm:$0x3]
        %607 = vset.pattern.permute.xlu0 27
        %608 = vperm.xlu0 %607, %v504
        %v609 = vpop.permute.xlu0 %608
        %v612 = vperm.slane %v606, 0
        %v613 = vperm.slane %v606, 1
        %v616 = vmul.f32 %v609, %v612
        %v617 = vmul.f32 %v609, %v613
        %v618 = vadd.f32 %v604, %v616
        %v619 = vadd.f32 %v605, %v617
        %v620 = vld [vmem:[%s260] ss:$4 sm:$0x3]
        %621 = vset.pattern.permute.xlu0 28
        %622 = vperm.xlu0 %621, %v504
        %v623 = vpop.permute.xlu0 %622
        %v626 = vperm.slane %v620, 0
        %v627 = vperm.slane %v620, 1
        %v630 = vmul.f32 %v623, %v626
        %v631 = vmul.f32 %v623, %v627
        %v632 = vadd.f32 %v618, %v630
        %v633 = vadd.f32 %v619, %v631
        %v634 = vld [vmem:[%s277] ss:$4 sm:$0x3]
        %635 = vset.pattern.permute.xlu0 29
        %636 = vperm.xlu0 %635, %v504
        %v637 = vpop.permute.xlu0 %636
        %v640 = vperm.slane %v634, 0
        %v641 = vperm.slane %v634, 1
        %v644 = vmul.f32 %v637, %v640
        %v645 = vmul.f32 %v637, %v641
        %v646 = vadd.f32 %v632, %v644
        %v647 = vadd.f32 %v633, %v645
        %v648 = vld [vmem:[%s292] ss:$4 sm:$0x3]
        %649 = vset.pattern.permute.xlu0 30
        %650 = vperm.xlu0 %649, %v504
        %v651 = vpop.permute.xlu0 %650
        %v654 = vperm.slane %v648, 0
        %v655 = vperm.slane %v648, 1
        %v658 = vmul.f32 %v651, %v654
        %v659 = vmul.f32 %v651, %v655
        %v660 = vadd.f32 %v646, %v658
        %v661 = vadd.f32 %v647, %v659
        %v662 = vld [vmem:[%s307] ss:$4 sm:$0x3]
        %663 = vset.pattern.permute.xlu0 31
        %664 = vperm.xlu0 %663, %v504
        %v665 = vpop.permute.xlu0 %664
        %v668 = vperm.slane %v662, 0
        %v669 = vperm.slane %v662, 1
        %v672 = vmul.f32 %v665, %v668
        %v673 = vmul.f32 %v665, %v669
        %v674 = vadd.f32 %v660, %v672
        %v675 = vadd.f32 %v661, %v673
        %v676 = vld [vmem:[%s167] ss:$4 sm:$0x3]
        %677 = vset.pattern.permute.xlu0 32
        %678 = vperm.xlu0 %677, %v504
        %v679 = vpop.permute.xlu0 %678
        %v682 = vperm.slane %v676, 0
        %v683 = vperm.slane %v676, 1
        %v686 = vmul.f32 %v679, %v682
        %v687 = vmul.f32 %v679, %v683
        %v688 = vadd.f32 %v674, %v686
        %v689 = vadd.f32 %v675, %v687
        %v690 = vld [vmem:[%s213] ss:$4 sm:$0x3]
        %691 = vset.pattern.permute.xlu0 33
        %692 = vperm.xlu0 %691, %v504
        %v693 = vpop.permute.xlu0 %692
        %v696 = vperm.slane %v690, 0
        %v697 = vperm.slane %v690, 1
        %v700 = vmul.f32 %v693, %v696
        %v701 = vmul.f32 %v693, %v697
        %v702 = vadd.f32 %v688, %v700
        %v703 = vadd.f32 %v689, %v701
        %v704 = vld [vmem:[%s228] ss:$4 sm:$0x3]
        %705 = vset.pattern.permute.xlu0 34
        %706 = vperm.xlu0 %705, %v504
        %v707 = vpop.permute.xlu0 %706
        %v710 = vperm.slane %v704, 0
        %v711 = vperm.slane %v704, 1
        %v714 = vmul.f32 %v707, %v710
        %v715 = vmul.f32 %v707, %v711
        %v716 = vadd.f32 %v702, %v714
        %v717 = vadd.f32 %v703, %v715
        %v718 = vld [vmem:[%s243] ss:$4 sm:$0x3]
        %719 = vset.pattern.permute.xlu0 35
        %720 = vperm.xlu0 %719, %v504
        %v721 = vpop.permute.xlu0 %720
        %v724 = vperm.slane %v718, 0
        %v725 = vperm.slane %v718, 1
        %v728 = vmul.f32 %v721, %v724
        %v729 = vmul.f32 %v721, %v725
        %v730 = vadd.f32 %v716, %v728
        %v731 = vadd.f32 %v717, %v729
        %s732 = scalar_lea.vmem %s190, 48 [#allocation5]
        %733 = vst [vmem:[%s732] sm:$0xff] %v730
        %734 = vst [vmem:[%s732 + $0x8] sm:$0xff] %v731
        %s735 = sand.u32 %s96, 1
        %s736 = scalar_lea.sflag [#allocation4], %s735
        %s737 = sand.u32 %s96, 1
        %s738 = smul.addr %s737, 64
        %s739 = scalar_lea.vmem [#allocation5], %s738
        // Predicated region
        $region37: #{tpu_custom_call.1} parent=31 // pred_check
          %p740 = pneg %p106
        $region38: #{tpu_custom_call.1} parent=31 // pred_check_branch
          %742 = sbr.rel (%p740) target = $region40
        $region39: #{tpu_custom_call.1} parent=31 // pred_region
          %744 = vsyncadd %s736, 0
          %s745 = smul.addr %s20, 8
          %s746 = smul.addr %s745, 8
          %s747 = scalar_lea.hbm %s3, %s746
          %s748 = sshll.u32 %s739, 4
          %s749 = int_to_ptr.vmem [resolvable:$true] %s748
          %s750 = sshll.u32 %s747, 4
          %s751 = int_to_ptr.hbm [resolvable:$true] %s750
          %756 = dma.vmem_to_hbm [thread:$0]  %s749, 1024, %s751, %s736, 256, 256, 16
        $region40: #{tpu_custom_call.1} parent=31 // pred_fallthru
          _
      $region32: #{tpu_custom_call.1} parent=5 // pred_fallthru
        _
      %p757 = scmp.le.s32.totalorder 2, %s15
      // Predicated region
      $region41: #{tpu_custom_call.1} parent=5 // pred_check
        %p758 = pneg %p757
      $region42: #{tpu_custom_call.1} parent=5 // pred_check_branch
        %760 = sbr.rel (%p758) target = $region44
      $region43: #{tpu_custom_call.1} parent=5 // pred_region
        %s761 = ssub.s32 %s15, 2
        // Predicated region
        $region45: #{tpu_custom_call.1} parent=43 // pred_check
          %p762 = pneg %p112
        $region46: #{tpu_custom_call.1} parent=43 // pred_check_branch
          %764 = sbr.rel (%p762) target = $region48
        $region47: #{tpu_custom_call.1} parent=43 // pred_region
          %s765 = sand.u32 %s97, 1
          %s766 = scalar_lea.sflag [#allocation4], %s765
          %s767 = sand.u32 %s97, 1
          %s768 = smul.addr %s767, 64
          %s769 = scalar_lea.vmem [#allocation5], %s768
          %771 = dma.done %s766, 1024
        $region48: #{tpu_custom_call.1} parent=43 // pred_fallthru
          _
      $region44: #{tpu_custom_call.1} parent=5 // pred_fallthru
        _
    $region6: #{tpu_custom_call.1} parent=1 // loop_footer
      %s19 = sadd.s32 1, %s15
    $region7: #{tpu_custom_call.1} parent=1 // loop_footer_branch
      %14 = sbr.rel target = $region3
    $region8: #{tpu_custom_call.1} parent=1 // loop_exit
      _
    %772 = vsyncpa [#allocation3], 1
    %s773 = scalar_lea.sflag [#allocation3], 1
    %774 = vsyncpa %s773, 1
    %775 = vsyncpa [#allocation4], 1
    %s776 = scalar_lea.sflag [#allocation4], 1
    %777 = vsyncpa %s776, 1

</llo_original>
